<compile_context>
chip_gen: v7x
topology: tpu7x:2x2x1
jax: 0.10.0
libtpu: 0.0.40
codegen_flags: <defaults>
</compile_context>

<pallas_src>
import functools

import jax
import jax.numpy as jnp
from jax.experimental import pallas as pl
from jax.experimental.pallas import tpu as pltpu


def _round_up(x: int, m: int) -> int:
    return (x + m - 1) // m * m


def _cdiv(a: int, b: int) -> int:
    return -(-a // b)


def mlp_kernel(x_ref, w1_ref, b1_ref, w2_ref, b2_ref,
               w3_ref, b3_ref, w4_ref, b4_ref, o_ref):
    """Fused 4x (Linear -> ReLU). bf16 MXU operands, f32 accumulation/elementwise."""
    cdt = w1_ref.dtype  # bf16 compute dtype for MXU operands

    # x arrives as f32 straight from HBM; cast to bf16 rides the VPU (free
    # filler slot) instead of costing a wrapper-side pad/cast HBM round trip.
    h = jnp.dot(x_ref[...].astype(cdt), w1_ref[...],
                preferred_element_type=jnp.float32)
    h = jnp.maximum(h + b1_ref[...], 0.0)

    h = jnp.dot(h.astype(cdt), w2_ref[...], preferred_element_type=jnp.float32)
    h = jnp.maximum(h + b2_ref[...], 0.0)

    h = jnp.dot(h.astype(cdt), w3_ref[...], preferred_element_type=jnp.float32)
    h = jnp.maximum(h + b3_ref[...], 0.0)

    h = jnp.dot(h.astype(cdt), w4_ref[...], preferred_element_type=jnp.float32)
    h = jnp.maximum(h + b4_ref[...], 0.0)   # final ReLU, as in the PyTorch spec

    o_ref[...] = h.astype(o_ref.dtype)


@functools.partial(jax.jit, static_argnames=("batch_tile",))
def mlp_forward(x_nchw, params, *, batch_tile: int = 512):
    """x_nchw: (B, 1, 28, 28) float32. Returns (B, 10) float32."""
    w1, b1, w2, b2, w3, b3, w4, b4 = params        # weights already (in, out) layout
    compute_dtype = jnp.bfloat16

    B = x_nchw.shape[0]
    x = x_nchw.reshape(B, -1).astype(jnp.float32)  # flatten, identical to torch .view
    K = x.shape[1]                                 # 784; kept unpadded (full-K block)
    n_out = w4.shape[1]

    # --- lane-align hidden / output dims (multiples of 128); K stays 784 ---
    H1p = _round_up(w1.shape[1], 128)
    H2p = _round_up(w2.shape[1], 128)
    H3p = _round_up(w3.shape[1], 128)
    Op = _round_up(n_out, 128)                     # 10 -> 128 (lane-dense output)

    # --- batch tile: sublane-aligned, capped so the grid has >= 2 steps when
    #     possible (lets v7x's two TensorCores both get work via "parallel") ---
    TB = min(batch_tile, max(8, _round_up(_cdiv(B, 2), 8)))
    Bp = _round_up(B, TB)
    n_steps = Bp // TB

    def pad2(a, rows, cols, dtype):
        return jnp.pad(a, ((0, rows - a.shape[0]), (0, cols - a.shape[1]))).astype(dtype)

    # x: only batch padding, stays f32 (no extra HBM copy when B % TB == 0).
    xp = jnp.pad(x, ((0, Bp - B), (0, 0)))
    w1p = pad2(w1, K, H1p, compute_dtype)
    w2p = pad2(w2, H1p, H2p, compute_dtype)
    w3p = pad2(w3, H2p, H3p, compute_dtype)
    w4p = pad2(w4, H3p, Op, compute_dtype)
    b1p = pad2(b1, 1, H1p, jnp.float32)
    b2p = pad2(b2, 1, H2p, jnp.float32)
    b3p = pad2(b3, 1, H3p, jnp.float32)
    b4p = pad2(b4, 1, Op, jnp.float32)

    # x / out tiles move with the batch grid; weights & biases stay VMEM-resident.
    tile_spec = lambda cols: pl.BlockSpec((TB, cols), lambda i: (i, 0))
    const_spec = lambda a: pl.BlockSpec(a.shape, lambda i: (0, 0))

    flops = 2 * Bp * (K * H1p + H1p * H2p + H2p * H3p + H3p * Op)
    bytes_accessed = (Bp * K * 4                                        # x read (f32)
                      + (w1p.size + w2p.size + w3p.size + w4p.size) * 2  # weights bf16
                      + (b1p.size + b2p.size + b3p.size + b4p.size) * 4  # biases f32
                      + Bp * Op * 4)                                     # out write f32

    out_padded = pl.pallas_call(
        mlp_kernel,
        out_shape=jax.ShapeDtypeStruct((Bp, Op), jnp.float32),
        grid=(n_steps,),
        in_specs=[tile_spec(K),
                  const_spec(w1p), const_spec(b1p),
                  const_spec(w2p), const_spec(b2p),
                  const_spec(w3p), const_spec(b3p),
                  const_spec(w4p), const_spec(b4p)],
        out_specs=tile_spec(Op),
        compiler_params=pltpu.CompilerParams(
            dimension_semantics=("parallel",),
            vmem_limit_bytes=32 * 1024 * 1024),
        cost_estimate=pl.CostEstimate(flops=flops, transcendentals=0,
                                      bytes_accessed=bytes_accessed),
    )(xp, w1p, b1p, w2p, b2p, w3p, b3p, w4p, b4p)

    # Mandatory slice: padded batch rows hold relu(bias) chains, padded lanes
    # are zero -- neither must leak to consumers.
    return out_padded[:B, :n_out]


def init_params(key, in_features=784, hidden_size=32, out_features=10):
    """PyTorch-style uniform(+-1/sqrt(fan_in)) init; weights stored as (in, out)."""
    dims = [(in_features, hidden_size),
            (hidden_size, hidden_size),
            (hidden_size, hidden_size),
            (hidden_size, out_features)]
    params = []
    for fan_in, fan_out in dims:
        key, kw, kb = jax.random.split(key, 3)
        bound = 1.0 / jnp.sqrt(float(fan_in))
        w = jax.random.uniform(kw, (fan_in, fan_out), jnp.float32, -bound, bound)
        b = jax.random.uniform(kb, (1, fan_out), jnp.float32, -bound, bound)
        params += [w, b]
    return params


def reference_forward(x_nchw, params, compute_dtype=None):
    """Plain-JAX reference identical to the PyTorch forward.
    If compute_dtype is given, operands are quantized the same way the kernel does
    (bf16 MXU operands, f32 accumulation) so comparison can be bit-tight."""
    x = x_nchw.reshape(x_nchw.shape[0], -1).astype(jnp.float32)
    w1, b1, w2, b2, w3, b3, w4, b4 = params

    def q(a):
        return a.astype(compute_dtype).astype(jnp.float32) if compute_dtype else a

    h = jnp.maximum(q(x) @ q(w1) + b1, 0.0)
    h = jnp.maximum(q(h) @ q(w2) + b2, 0.0)
    h = jnp.maximum(q(h) @ q(w3) + b3, 0.0)
    h = jnp.maximum(q(h) @ q(w4) + b4, 0.0)
    return h


if __name__ == "__main__":
    key = jax.random.PRNGKey(0)
    k_x, k_p = jax.random.split(key)

    B, HIDDEN = 2, 32  # small demo shapes; module default hidden_size=400
    x = jax.random.normal(k_x, (B, 1, 28, 28), jnp.float32)
    params = init_params(k_p, in_features=28 * 28, hidden_size=HIDDEN,
                         out_features=10)

    out = mlp_forward(x, params)
    out = jax.block_until_ready(out)
    assert out.shape == (B, 10), out.shape

    # Precision-matched reference (same bf16 operand quantization): tight check.
    ref_bf16 = reference_forward(x, params, compute_dtype=jnp.bfloat16)
    assert jnp.allclose(out, ref_bf16, atol=2e-3, rtol=2e-3), "mismatch vs bf16 ref"

    # Full-f32 PyTorch-equivalent reference: loose check (bf16 operand quantization).
    ref_f32 = reference_forward(x, params)
    assert jnp.allclose(out, ref_f32, atol=5e-2, rtol=5e-2), "mismatch vs f32 ref"

    print("KERNEL_OK")
</pallas_src>

<mosaic_0001>
module attributes {stable_mosaic.version = 11 : i64} {
  func.func @mlp_kernel(%arg0: i32, %arg1: memref<8x784xf32, #tpu.memory_space<vmem>>, %arg2: memref<784x128xbf16, #tpu.memory_space<vmem>>, %arg3: memref<1x128xf32, #tpu.memory_space<vmem>>, %arg4: memref<128x128xbf16, #tpu.memory_space<vmem>>, %arg5: memref<1x128xf32, #tpu.memory_space<vmem>>, %arg6: memref<128x128xbf16, #tpu.memory_space<vmem>>, %arg7: memref<1x128xf32, #tpu.memory_space<vmem>>, %arg8: memref<128x128xbf16, #tpu.memory_space<vmem>>, %arg9: memref<1x128xf32, #tpu.memory_space<vmem>>, %arg10: memref<8x128xf32, #tpu.memory_space<vmem>>) attributes {dimension_semantics = [#tpu.dimension_semantics<parallel>], iteration_bounds = array<i64: 1>, scalar_prefetch = 0 : i64, scratch_operands = 0 : i64, tpu.core_type = #tpu.core_type<tc>, window_params = [{transform_indices = @transform_0, window_bounds = array<i64: 8, 784>}, {pipeline_mode = #tpu.pipeline_mode<synchronous>, transform_indices = @transform_1, window_bounds = array<i64: 784, 128>}, {pipeline_mode = #tpu.pipeline_mode<synchronous>, transform_indices = @transform_2, window_bounds = array<i64: 1, 128>}, {pipeline_mode = #tpu.pipeline_mode<synchronous>, transform_indices = @transform_3, window_bounds = array<i64: 128, 128>}, {pipeline_mode = #tpu.pipeline_mode<synchronous>, transform_indices = @transform_4, window_bounds = array<i64: 1, 128>}, {pipeline_mode = #tpu.pipeline_mode<synchronous>, transform_indices = @transform_5, window_bounds = array<i64: 128, 128>}, {pipeline_mode = #tpu.pipeline_mode<synchronous>, transform_indices = @transform_6, window_bounds = array<i64: 1, 128>}, {pipeline_mode = #tpu.pipeline_mode<synchronous>, transform_indices = @transform_7, window_bounds = array<i64: 128, 128>}, {pipeline_mode = #tpu.pipeline_mode<synchronous>, transform_indices = @transform_8, window_bounds = array<i64: 1, 128>}, {transform_indices = @transform_9, window_bounds = array<i64: 8, 128>}]} {
    %c0 = arith.constant 0 : index
    %c0_0 = arith.constant 0 : index
    %0 = vector.load %arg1[%c0, %c0_0] : memref<8x784xf32, #tpu.memory_space<vmem>>, vector<8x784xf32>
    %1 = arith.truncf %0 : vector<8x784xf32> to vector<8x784xbf16>
    %c0_1 = arith.constant 0 : index
    %c0_2 = arith.constant 0 : index
    %2 = vector.load %arg2[%c0_1, %c0_2] : memref<784x128xbf16, #tpu.memory_space<vmem>>, vector<784x128xbf16>
    %cst = arith.constant dense<0.000000e+00> : vector<8x128xf32>
    %3 = tpu.matmul %1, %2, %cst {dimension_numbers = #tpu.dot_dimension_numbers<[1], [0], [0], [1], [0, 0, 1, 1], [], []>} : vector<8x784xbf16>, vector<784x128xbf16>, vector<8x128xf32> -> vector<8x128xf32>
    %c0_3 = arith.constant 0 : index
    %c0_4 = arith.constant 0 : index
    %4 = vector.load %arg3[%c0_3, %c0_4] : memref<1x128xf32, #tpu.memory_space<vmem>>, vector<1x128xf32>
    %5 = vector.broadcast %4 : vector<1x128xf32> to vector<8x128xf32>
    %6 = arith.addf %3, %5 : vector<8x128xf32>
    %cst_5 = arith.constant 0.000000e+00 : f32
    %7 = vector.broadcast %cst_5 : f32 to vector<8x128xf32>
    %8 = arith.maximumf %6, %7 : vector<8x128xf32>
    %9 = arith.truncf %8 : vector<8x128xf32> to vector<8x128xbf16>
    %c0_6 = arith.constant 0 : index
    %c0_7 = arith.constant 0 : index
    %10 = vector.load %arg4[%c0_6, %c0_7] : memref<128x128xbf16, #tpu.memory_space<vmem>>, vector<128x128xbf16>
    %cst_8 = arith.constant dense<0.000000e+00> : vector<8x128xf32>
    %11 = tpu.matmul %9, %10, %cst_8 {dimension_numbers = #tpu.dot_dimension_numbers<[1], [0], [0], [1], [0, 0, 1, 1], [], []>} : vector<8x128xbf16>, vector<128x128xbf16>, vector<8x128xf32> -> vector<8x128xf32>
    %c0_9 = arith.constant 0 : index
    %c0_10 = arith.constant 0 : index
    %12 = vector.load %arg5[%c0_9, %c0_10] : memref<1x128xf32, #tpu.memory_space<vmem>>, vector<1x128xf32>
    %13 = vector.broadcast %12 : vector<1x128xf32> to vector<8x128xf32>
    %14 = arith.addf %11, %13 : vector<8x128xf32>
    %cst_11 = arith.constant 0.000000e+00 : f32
    %15 = vector.broadcast %cst_11 : f32 to vector<8x128xf32>
    %16 = arith.maximumf %14, %15 : vector<8x128xf32>
    %17 = arith.truncf %16 : vector<8x128xf32> to vector<8x128xbf16>
    %c0_12 = arith.constant 0 : index
    %c0_13 = arith.constant 0 : index
    %18 = vector.load %arg6[%c0_12, %c0_13] : memref<128x128xbf16, #tpu.memory_space<vmem>>, vector<128x128xbf16>
    %cst_14 = arith.constant dense<0.000000e+00> : vector<8x128xf32>
    %19 = tpu.matmul %17, %18, %cst_14 {dimension_numbers = #tpu.dot_dimension_numbers<[1], [0], [0], [1], [0, 0, 1, 1], [], []>} : vector<8x128xbf16>, vector<128x128xbf16>, vector<8x128xf32> -> vector<8x128xf32>
    %c0_15 = arith.constant 0 : index
    %c0_16 = arith.constant 0 : index
    %20 = vector.load %arg7[%c0_15, %c0_16] : memref<1x128xf32, #tpu.memory_space<vmem>>, vector<1x128xf32>
    %21 = vector.broadcast %20 : vector<1x128xf32> to vector<8x128xf32>
    %22 = arith.addf %19, %21 : vector<8x128xf32>
    %cst_17 = arith.constant 0.000000e+00 : f32
    %23 = vector.broadcast %cst_17 : f32 to vector<8x128xf32>
    %24 = arith.maximumf %22, %23 : vector<8x128xf32>
    %25 = arith.truncf %24 : vector<8x128xf32> to vector<8x128xbf16>
    %c0_18 = arith.constant 0 : index
    %c0_19 = arith.constant 0 : index
    %26 = vector.load %arg8[%c0_18, %c0_19] : memref<128x128xbf16, #tpu.memory_space<vmem>>, vector<128x128xbf16>
    %cst_20 = arith.constant dense<0.000000e+00> : vector<8x128xf32>
    %27 = tpu.matmul %25, %26, %cst_20 {dimension_numbers = #tpu.dot_dimension_numbers<[1], [0], [0], [1], [0, 0, 1, 1], [], []>} : vector<8x128xbf16>, vector<128x128xbf16>, vector<8x128xf32> -> vector<8x128xf32>
    %c0_21 = arith.constant 0 : index
    %c0_22 = arith.constant 0 : index
    %28 = vector.load %arg9[%c0_21, %c0_22] : memref<1x128xf32, #tpu.memory_space<vmem>>, vector<1x128xf32>
    %29 = vector.broadcast %28 : vector<1x128xf32> to vector<8x128xf32>
    %30 = arith.addf %27, %29 : vector<8x128xf32>
    %cst_23 = arith.constant 0.000000e+00 : f32
    %31 = vector.broadcast %cst_23 : f32 to vector<8x128xf32>
    %32 = arith.maximumf %30, %31 : vector<8x128xf32>
    %c0_24 = arith.constant 0 : index
    %c0_25 = arith.constant 0 : index
    %33 = vector.load %arg10[%c0_24, %c0_25] : memref<8x128xf32, #tpu.memory_space<vmem>>, vector<8x128xf32>
    tpu.vector_store %arg10[%c0_24, %c0_25], %32 {strides = array<i32>} : memref<8x128xf32, #tpu.memory_space<vmem>>, vector<8x128xf32>,
    return
  }
  func.func @transform_0(%arg0: i32) -> (i32, i32) {
    %c0_i32 = arith.constant 0 : i32
    %c0_i32_0 = arith.constant 0 : i32
    return %arg0, %c0_i32 : i32, i32
  }
  func.func @transform_1(%arg0: i32) -> (i32, i32) {
    %c0_i32 = arith.constant 0 : i32
    %c0_i32_0 = arith.constant 0 : i32
    %c0_i32_1 = arith.constant 0 : i32
    return %c0_i32, %c0_i32_0 : i32, i32
  }
  func.func @transform_2(%arg0: i32) -> (i32, i32) {
    %c0_i32 = arith.constant 0 : i32
    %c0_i32_0 = arith.constant 0 : i32
    %c0_i32_1 = arith.constant 0 : i32
    return %c0_i32, %c0_i32_0 : i32, i32
  }
  func.func @transform_3(%arg0: i32) -> (i32, i32) {
    %c0_i32 = arith.constant 0 : i32
    %c0_i32_0 = arith.constant 0 : i32
    %c0_i32_1 = arith.constant 0 : i32
    return %c0_i32, %c0_i32_0 : i32, i32
  }
  func.func @transform_4(%arg0: i32) -> (i32, i32) {
    %c0_i32 = arith.constant 0 : i32
    %c0_i32_0 = arith.constant 0 : i32
    %c0_i32_1 = arith.constant 0 : i32
    return %c0_i32, %c0_i32_0 : i32, i32
  }
  func.func @transform_5(%arg0: i32) -> (i32, i32) {
    %c0_i32 = arith.constant 0 : i32
    %c0_i32_0 = arith.constant 0 : i32
    %c0_i32_1 = arith.constant 0 : i32
    return %c0_i32, %c0_i32_0 : i32, i32
  }
  func.func @transform_6(%arg0: i32) -> (i32, i32) {
    %c0_i32 = arith.constant 0 : i32
    %c0_i32_0 = arith.constant 0 : i32
    %c0_i32_1 = arith.constant 0 : i32
    return %c0_i32, %c0_i32_0 : i32, i32
  }
  func.func @transform_7(%arg0: i32) -> (i32, i32) {
    %c0_i32 = arith.constant 0 : i32
    %c0_i32_0 = arith.constant 0 : i32
    %c0_i32_1 = arith.constant 0 : i32
    return %c0_i32, %c0_i32_0 : i32, i32
  }
  func.func @transform_8(%arg0: i32) -> (i32, i32) {
    %c0_i32 = arith.constant 0 : i32
    %c0_i32_0 = arith.constant 0 : i32
    %c0_i32_1 = arith.constant 0 : i32
    return %c0_i32, %c0_i32_0 : i32, i32
  }
  func.func @transform_9(%arg0: i32) -> (i32, i32) {
    %c0_i32 = arith.constant 0 : i32
    %c0_i32_0 = arith.constant 0 : i32
    return %arg0, %c0_i32 : i32, i32
  }
}

</mosaic_0001>

<llo_original>
// kernel: mlp_forward.1
$region0: #{mlp_forward.1}
  #allocation0 [shape = 'u32[]', space=smem, size = 0x4, offset = 0x4, fixed_abs, tag = 'smem constant byte address 0x4 - core index']
  #allocation1 [shape = 'u32[144,128]{1,0:T(1,128)}', space=vmem, size = 0x12000, scoped, tag = 'internal scratch']
  %s0 = inlined_call_operand.vmem [shape: f32[8,784], index: 0, kind: input, shape index: {}]
  %s1 = inlined_call_operand.vmem [shape: bf16[784,128], index: 1, kind: input, shape index: {}]
  %s2 = inlined_call_operand.vmem [shape: f32[1,128], index: 2, kind: input, shape index: {}]
  %s3 = inlined_call_operand.vmem [shape: bf16[128,128], index: 3, kind: input, shape index: {}]
  %s4 = inlined_call_operand.vmem [shape: f32[1,128], index: 4, kind: input, shape index: {}]
  %s5 = inlined_call_operand.vmem [shape: bf16[128,128], index: 5, kind: input, shape index: {}]
  %s6 = inlined_call_operand.vmem [shape: f32[1,128], index: 6, kind: input, shape index: {}]
  %s7 = inlined_call_operand.vmem [shape: bf16[128,128], index: 7, kind: input, shape index: {}]
  %s8 = inlined_call_operand.vmem [shape: f32[1,128], index: 8, kind: input, shape index: {}]
  %s9 = inlined_call_operand.vmem [shape: f32[8,128], index: 9, kind: output, shape index: {}]
  %s10 = sld [smem:[#allocation0]]
  $region46: #{mlp_forward.1} parent=0
    _
  %s12 = ssub.s32 1, %s10
  %s13 = scalar_select 0, %s12, %s10
  // Predicated region
  $region2: #{mlp_forward.1} parent=0 // pred_check
    _
  $region3: #{mlp_forward.1} parent=0 // pred_check_branch
    %15 = sbr.rel (0) target = $region5
  $region4: #{mlp_forward.1} parent=0 // pred_region
    _
  $region5: #{mlp_forward.1} parent=0 // pred_fallthru
    _
  // Predicated region
  $region6: #{mlp_forward.1} parent=0 // pred_check
    _
  $region7: #{mlp_forward.1} parent=0 // pred_check_branch
    %17 = sbr.rel (0) target = $region9
  $region8: #{mlp_forward.1} parent=0 // pred_region
    _
  $region9: #{mlp_forward.1} parent=0 // pred_fallthru
    _
  // Predicated region
  $region10: #{mlp_forward.1} parent=0 // pred_check
    _
  $region11: #{mlp_forward.1} parent=0 // pred_check_branch
    %19 = sbr.rel (0) target = $region13
  $region12: #{mlp_forward.1} parent=0 // pred_region
    _
  $region13: #{mlp_forward.1} parent=0 // pred_fallthru
    _
  // Predicated region
  $region14: #{mlp_forward.1} parent=0 // pred_check
    _
  $region15: #{mlp_forward.1} parent=0 // pred_check_branch
    %21 = sbr.rel (0) target = $region17
  $region16: #{mlp_forward.1} parent=0 // pred_region
    _
  $region17: #{mlp_forward.1} parent=0 // pred_fallthru
    _
  // Predicated region
  $region18: #{mlp_forward.1} parent=0 // pred_check
    _
  $region19: #{mlp_forward.1} parent=0 // pred_check_branch
    %23 = sbr.rel (0) target = $region21
  $region20: #{mlp_forward.1} parent=0 // pred_region
    _
  $region21: #{mlp_forward.1} parent=0 // pred_fallthru
    _
  // Predicated region
  $region22: #{mlp_forward.1} parent=0 // pred_check
    _
  $region23: #{mlp_forward.1} parent=0 // pred_check_branch
    %25 = sbr.rel (0) target = $region25
  $region24: #{mlp_forward.1} parent=0 // pred_region
    _
  $region25: #{mlp_forward.1} parent=0 // pred_fallthru
    _
  // Predicated region
  $region26: #{mlp_forward.1} parent=0 // pred_check
    _
  $region27: #{mlp_forward.1} parent=0 // pred_check_branch
    %27 = sbr.rel (0) target = $region29
  $region28: #{mlp_forward.1} parent=0 // pred_region
    _
  $region29: #{mlp_forward.1} parent=0 // pred_fallthru
    _
  // Predicated region
  $region30: #{mlp_forward.1} parent=0 // pred_check
    _
  $region31: #{mlp_forward.1} parent=0 // pred_check_branch
    %29 = sbr.rel (0) target = $region33
  $region32: #{mlp_forward.1} parent=0 // pred_region
    _
  $region33: #{mlp_forward.1} parent=0 // pred_fallthru
    _
  // Predicated region
  $region34: #{mlp_forward.1} parent=0 // pred_check
    _
  $region35: #{mlp_forward.1} parent=0 // pred_check_branch
    %31 = sbr.rel (0) target = $region37
  $region36: #{mlp_forward.1} parent=0 // pred_region
    _
  $region37: #{mlp_forward.1} parent=0 // pred_fallthru
    _
  %v33 = vld [vmem:[%s0] sm:$0xff]
  %v34 = vld [vmem:[%s0 + $0x8] sm:$0xff]
  %v35 = vld [vmem:[%s0 + $0x10] sm:$0xff]
  %v36 = vld [vmem:[%s0 + $0x18] sm:$0xff]
  %v37 = vld [vmem:[%s0 + $0x20] sm:$0xff]
  %v38 = vld [vmem:[%s0 + $0x28] sm:$0xff]
  %v39 = vld [vmem:[%s0 + $0x30] sm:$0xff]
  %v40 = vpack.c.bf16 %v33, %v33
  %v41 = vpack.c.bf16 %v34, %v34
  %v42 = vpack.c.bf16 %v35, %v35
  %v43 = vpack.c.bf16 %v36, %v36
  %v44 = vpack.c.bf16 %v37, %v37
  %v45 = vpack.c.bf16 %v38, %v38
  %v46 = vpack.c.bf16 %v39, %v39
  %v47 = vld [vmem:[%s1] sm:$0xf]
  %v48 = vld [vmem:[%s1 + $0x4] sm:$0xf]
  %v49 = vld [vmem:[%s1 + $0x8] sm:$0xf]
  %v50 = vld [vmem:[%s1 + $0xc] sm:$0xf]
  %v51 = vld [vmem:[%s1 + $0x10] sm:$0xf]
  %v52 = vld [vmem:[%s1 + $0x14] sm:$0xf]
  %v53 = vld [vmem:[%s1 + $0x18] sm:$0xf]
  %v54 = vld [vmem:[%s1 + $0x1c] sm:$0xf]
  %v55 = vld [vmem:[%s1 + $0x20] sm:$0xf]
  %v56 = vld [vmem:[%s1 + $0x24] sm:$0xf]
  %v57 = vld [vmem:[%s1 + $0x28] sm:$0xf]
  %v58 = vld [vmem:[%s1 + $0x2c] sm:$0xf]
  %v59 = vld [vmem:[%s1 + $0x30] sm:$0xf]
  %v60 = vld [vmem:[%s1 + $0x34] sm:$0xf]
  %v61 = vld [vmem:[%s1 + $0x38] sm:$0xf]
  %v62 = vld [vmem:[%s1 + $0x3c] sm:$0xf]
  %v63 = vld [vmem:[%s1 + $0x40] sm:$0xf]
  %v64 = vld [vmem:[%s1 + $0x44] sm:$0xf]
  %v65 = vld [vmem:[%s1 + $0x48] sm:$0xf]
  %v66 = vld [vmem:[%s1 + $0x4c] sm:$0xf]
  %v67 = vld [vmem:[%s1 + $0x50] sm:$0xf]
  %v68 = vld [vmem:[%s1 + $0x54] sm:$0xf]
  %v69 = vld [vmem:[%s1 + $0x58] sm:$0xf]
  %v70 = vld [vmem:[%s1 + $0x5c] sm:$0xf]
  %v71 = vld [vmem:[%s1 + $0x60] sm:$0xf]
  %v72 = vld [vmem:[%s1 + $0x64] sm:$0xf]
  %v73 = vld [vmem:[%s1 + $0x68] sm:$0xf]
  %v74 = vld [vmem:[%s1 + $0x6c] sm:$0xf]
  %v75 = vld [vmem:[%s1 + $0x70] sm:$0xf]
  %v76 = vld [vmem:[%s1 + $0x74] sm:$0xf]
  %v77 = vld [vmem:[%s1 + $0x78] sm:$0xf]
  %v78 = vld [vmem:[%s1 + $0x7c] sm:$0xf]
  %v79 = vld [vmem:[%s1 + $0x80] sm:$0xf]
  %v80 = vld [vmem:[%s1 + $0x84] sm:$0xf]
  %v81 = vld [vmem:[%s1 + $0x88] sm:$0xf]
  %v82 = vld [vmem:[%s1 + $0x8c] sm:$0xf]
  %v83 = vld [vmem:[%s1 + $0x90] sm:$0xf]
  %v84 = vld [vmem:[%s1 + $0x94] sm:$0xf]
  %v85 = vld [vmem:[%s1 + $0x98] sm:$0xf]
  %v86 = vld [vmem:[%s1 + $0x9c] sm:$0xf]
  %v87 = vld [vmem:[%s1 + $0xa0] sm:$0xf]
  %v88 = vld [vmem:[%s1 + $0xa4] sm:$0xf]
  %v89 = vld [vmem:[%s1 + $0xa8] sm:$0xf]
  %v90 = vld [vmem:[%s1 + $0xac] sm:$0xf]
  %v91 = vld [vmem:[%s1 + $0xb0] sm:$0xf]
  %v92 = vld [vmem:[%s1 + $0xb4] sm:$0xf]
  %v93 = vld [vmem:[%s1 + $0xb8] sm:$0xf]
  %v94 = vld [vmem:[%s1 + $0xbc] sm:$0xf]
  %v95 = vld [vmem:[%s1 + $0xc0] sm:$0xf]
  %v96 = vld [vmem:[%s1 + $0xc4] sm:$0xf]
  %v97 = vld [vmem:[%s1 + $0xc8] sm:$0xf]
  %v98 = vld [vmem:[%s1 + $0xcc] sm:$0xf]
  %v99 = vld [vmem:[%s1 + $0xd0] sm:$0xf]
  %v100 = vld [vmem:[%s1 + $0xd4] sm:$0xf]
  %v101 = vld [vmem:[%s1 + $0xd8] sm:$0xf]
  %v102 = vld [vmem:[%s1 + $0xdc] sm:$0xf]
  %v103 = vld [vmem:[%s1 + $0xe0] sm:$0xf]
  %v104 = vld [vmem:[%s1 + $0xe4] sm:$0xf]
  %v105 = vld [vmem:[%s1 + $0xe8] sm:$0xf]
  %v106 = vld [vmem:[%s1 + $0xec] sm:$0xf]
  %v107 = vld [vmem:[%s1 + $0xf0] sm:$0xf]
  %v108 = vld [vmem:[%s1 + $0xf4] sm:$0xf]
  %v109 = vld [vmem:[%s1 + $0xf8] sm:$0xf]
  %v110 = vld [vmem:[%s1 + $0xfc] sm:$0xf]
  %v111 = vld [vmem:[%s1 + $0x100] sm:$0xf]
  %v112 = vld [vmem:[%s1 + $0x104] sm:$0xf]
  %v113 = vld [vmem:[%s1 + $0x108] sm:$0xf]
  %v114 = vld [vmem:[%s1 + $0x10c] sm:$0xf]
  %v115 = vld [vmem:[%s1 + $0x110] sm:$0xf]
  %v116 = vld [vmem:[%s1 + $0x114] sm:$0xf]
  %v117 = vld [vmem:[%s1 + $0x118] sm:$0xf]
  %v118 = vld [vmem:[%s1 + $0x11c] sm:$0xf]
  %v119 = vld [vmem:[%s1 + $0x120] sm:$0xf]
  %v120 = vld [vmem:[%s1 + $0x124] sm:$0xf]
  %v121 = vld [vmem:[%s1 + $0x128] sm:$0xf]
  %v122 = vld [vmem:[%s1 + $0x12c] sm:$0xf]
  %v123 = vld [vmem:[%s1 + $0x130] sm:$0xf]
  %v124 = vld [vmem:[%s1 + $0x134] sm:$0xf]
  %v125 = vld [vmem:[%s1 + $0x138] sm:$0xf]
  %v126 = vld [vmem:[%s1 + $0x13c] sm:$0xf]
  %v127 = vld [vmem:[%s1 + $0x140] sm:$0xf]
  %v128 = vld [vmem:[%s1 + $0x144] sm:$0xf]
  %v129 = vld [vmem:[%s1 + $0x148] sm:$0xf]
  %v130 = vld [vmem:[%s1 + $0x14c] sm:$0xf]
  %v131 = vld [vmem:[%s1 + $0x150] sm:$0xf]
  %v132 = vld [vmem:[%s1 + $0x154] sm:$0xf]
  %v133 = vld [vmem:[%s1 + $0x158] sm:$0xf]
  %v134 = vld [vmem:[%s1 + $0x15c] sm:$0xf]
  %v135 = vld [vmem:[%s1 + $0x160] sm:$0xf]
  %v136 = vld [vmem:[%s1 + $0x164] sm:$0xf]
  %v137 = vld [vmem:[%s1 + $0x168] sm:$0xf]
  %v138 = vld [vmem:[%s1 + $0x16c] sm:$0xf]
  %v139 = vld [vmem:[%s1 + $0x170] sm:$0xf]
  %v140 = vld [vmem:[%s1 + $0x174] sm:$0xf]
  %v141 = vld [vmem:[%s1 + $0x178] sm:$0xf]
  %v142 = vld [vmem:[%s1 + $0x17c] sm:$0xf]
  %v143 = vld [vmem:[%s1 + $0x180] sm:$0xf]
  %v144 = vld [vmem:[%s1 + $0x184] sm:$0xf]
  %v145 = vld [vmem:[%s2] sm:$0x1]
  %v147 = vlaneseq
  %v148 = vshrl.u32 %v147, 7
  %v149 = vsub.s32 0, %v148
  %v150 = vrot.slane %v145, %v149
  %v250 = vunpack.c.l.b16 %v47
  %v251 = vunpack.c.l.b16 %v48
  %v252 = vunpack.c.l.b16 %v49
  %v253 = vunpack.c.l.b16 %v50
  %v254 = vunpack.c.l.b16 %v51
  %v255 = vunpack.c.l.b16 %v52
  %v256 = vunpack.c.l.b16 %v53
  %v257 = vunpack.c.l.b16 %v54
  %v258 = vunpack.c.l.b16 %v55
  %v259 = vunpack.c.l.b16 %v56
  %v260 = vunpack.c.l.b16 %v57
  %v261 = vunpack.c.l.b16 %v58
  %v262 = vunpack.c.l.b16 %v59
  %v263 = vunpack.c.l.b16 %v60
  %v264 = vunpack.c.l.b16 %v61
  %v265 = vunpack.c.l.b16 %v62
  %v266 = vunpack.c.l.b16 %v63
  %v267 = vunpack.c.l.b16 %v64
  %v268 = vunpack.c.l.b16 %v65
  %v269 = vunpack.c.l.b16 %v66
  %v270 = vunpack.c.l.b16 %v67
  %v271 = vunpack.c.l.b16 %v68
  %v272 = vunpack.c.l.b16 %v69
  %v273 = vunpack.c.l.b16 %v70
  %v274 = vunpack.c.l.b16 %v71
  %v275 = vunpack.c.l.b16 %v72
  %v276 = vunpack.c.l.b16 %v73
  %v277 = vunpack.c.l.b16 %v74
  %v278 = vunpack.c.l.b16 %v75
  %v279 = vunpack.c.l.b16 %v76
  %v280 = vunpack.c.l.b16 %v77
  %v281 = vunpack.c.l.b16 %v78
  %v282 = vunpack.c.l.b16 %v79
  %v283 = vunpack.c.l.b16 %v80
  %v284 = vunpack.c.l.b16 %v81
  %v285 = vunpack.c.l.b16 %v82
  %v286 = vunpack.c.l.b16 %v83
  %v287 = vunpack.c.l.b16 %v84
  %v288 = vunpack.c.l.b16 %v85
  %v289 = vunpack.c.l.b16 %v86
  %v290 = vunpack.c.l.b16 %v87
  %v291 = vunpack.c.l.b16 %v88
  %v292 = vunpack.c.l.b16 %v89
  %v293 = vunpack.c.l.b16 %v90
  %v294 = vunpack.c.l.b16 %v91
  %v295 = vunpack.c.l.b16 %v92
  %v296 = vunpack.c.l.b16 %v93
  %v297 = vunpack.c.l.b16 %v94
  %v298 = vunpack.c.l.b16 %v95
  %v299 = vunpack.c.l.b16 %v96
  %v300 = vunpack.c.l.b16 %v97
  %v301 = vunpack.c.l.b16 %v98
  %v302 = vunpack.c.l.b16 %v99
  %v303 = vunpack.c.l.b16 %v100
  %v304 = vunpack.c.l.b16 %v101
  %v305 = vunpack.c.l.b16 %v102
  %v306 = vunpack.c.l.b16 %v103
  %v307 = vunpack.c.l.b16 %v104
  %v308 = vunpack.c.l.b16 %v105
  %v309 = vunpack.c.l.b16 %v106
  %v310 = vunpack.c.l.b16 %v107
  %v311 = vunpack.c.l.b16 %v108
  %v312 = vunpack.c.l.b16 %v109
  %v313 = vunpack.c.l.b16 %v110
  %v314 = vunpack.c.l.b16 %v111
  %v315 = vunpack.c.l.b16 %v112
  %v316 = vunpack.c.l.b16 %v113
  %v317 = vunpack.c.l.b16 %v114
  %v318 = vunpack.c.l.b16 %v115
  %v319 = vunpack.c.l.b16 %v116
  %v320 = vunpack.c.l.b16 %v117
  %v321 = vunpack.c.l.b16 %v118
  %v322 = vunpack.c.l.b16 %v119
  %v323 = vunpack.c.l.b16 %v120
  %v324 = vunpack.c.l.b16 %v121
  %v325 = vunpack.c.l.b16 %v122
  %v326 = vunpack.c.l.b16 %v123
  %v327 = vunpack.c.l.b16 %v124
  %v328 = vunpack.c.l.b16 %v125
  %v329 = vunpack.c.l.b16 %v126
  %v330 = vunpack.c.l.b16 %v127
  %v331 = vunpack.c.l.b16 %v128
  %v332 = vunpack.c.l.b16 %v129
  %v333 = vunpack.c.l.b16 %v130
  %v334 = vunpack.c.l.b16 %v131
  %v335 = vunpack.c.l.b16 %v132
  %v336 = vunpack.c.l.b16 %v133
  %v337 = vunpack.c.l.b16 %v134
  %v338 = vunpack.c.l.b16 %v135
  %v339 = vunpack.c.l.b16 %v136
  %v340 = vunpack.c.l.b16 %v137
  %v341 = vunpack.c.l.b16 %v138
  %v342 = vunpack.c.l.b16 %v139
  %v343 = vunpack.c.l.b16 %v140
  %v344 = vunpack.c.l.b16 %v141
  %v345 = vunpack.c.l.b16 %v142
  %v346 = vunpack.c.l.b16 %v143
  %v347 = vunpack.c.l.b16 %v144
  %v348 = vpack.c.b16 %v251, %v250
  %v349 = vpack.c.b16 %v253, %v252
  %v350 = vpack.c.b16 %v255, %v254
  %v351 = vpack.c.b16 %v257, %v256
  %v352 = vpack.c.b16 %v259, %v258
  %v353 = vpack.c.b16 %v261, %v260
  %v354 = vpack.c.b16 %v263, %v262
  %v355 = vpack.c.b16 %v265, %v264
  %v356 = vpack.c.b16 %v267, %v266
  %v357 = vpack.c.b16 %v269, %v268
  %v358 = vpack.c.b16 %v271, %v270
  %v359 = vpack.c.b16 %v273, %v272
  %v360 = vpack.c.b16 %v275, %v274
  %v361 = vpack.c.b16 %v277, %v276
  %v362 = vpack.c.b16 %v279, %v278
  %v363 = vpack.c.b16 %v281, %v280
  %v364 = vpack.c.b16 %v283, %v282
  %v365 = vpack.c.b16 %v285, %v284
  %v366 = vpack.c.b16 %v287, %v286
  %v367 = vpack.c.b16 %v289, %v288
  %v368 = vpack.c.b16 %v291, %v290
  %v369 = vpack.c.b16 %v293, %v292
  %v370 = vpack.c.b16 %v295, %v294
  %v371 = vpack.c.b16 %v297, %v296
  %v372 = vpack.c.b16 %v299, %v298
  %v373 = vpack.c.b16 %v301, %v300
  %v374 = vpack.c.b16 %v303, %v302
  %v375 = vpack.c.b16 %v305, %v304
  %v376 = vpack.c.b16 %v307, %v306
  %v377 = vpack.c.b16 %v309, %v308
  %v378 = vpack.c.b16 %v311, %v310
  %v379 = vpack.c.b16 %v313, %v312
  %v380 = vpack.c.b16 %v315, %v314
  %v381 = vpack.c.b16 %v317, %v316
  %v382 = vpack.c.b16 %v319, %v318
  %v383 = vpack.c.b16 %v321, %v320
  %v384 = vpack.c.b16 %v323, %v322
  %v385 = vpack.c.b16 %v325, %v324
  %v386 = vpack.c.b16 %v327, %v326
  %v387 = vpack.c.b16 %v329, %v328
  %v388 = vpack.c.b16 %v331, %v330
  %v389 = vpack.c.b16 %v333, %v332
  %v390 = vpack.c.b16 %v335, %v334
  %v391 = vpack.c.b16 %v337, %v336
  %v392 = vpack.c.b16 %v339, %v338
  %v393 = vpack.c.b16 %v341, %v340
  %v394 = vpack.c.b16 %v343, %v342
  %v395 = vpack.c.b16 %v345, %v344
  %v396 = vpack.c.b16 %v347, %v346
  %vm446 = vcmask 130048
  %v448 = vsel %vm446, %v46, 0
  %450 = vmatprep.subr.bf16.mxu0 0
  %451 = vmatpush1.bf16.msra.mxu0 %v348
  %452 = vmatprep.subr.bf16.mxu0 0
  %453 = vmatpush1.bf16.msra.mxu0 %v349
  %454 = vmatprep.subr.bf16.mxu0 0
  %455 = vmatpush1.bf16.msra.mxu0 %v350
  %456 = vmatprep.subr.bf16.mxu0 0
  %457 = vmatpush1.bf16.msra.mxu0 %v351
  %458 = vmatprep.subr.bf16.mxu0 0
  %459 = vmatpush1.bf16.msra.mxu0 %v352
  %460 = vmatprep.subr.bf16.mxu0 0
  %461 = vmatpush1.bf16.msra.mxu0 %v353
  %462 = vmatprep.subr.bf16.mxu0 0
  %463 = vmatpush1.bf16.msra.mxu0 %v354
  %464 = vmatprep.subr.bf16.mxu0 0
  %465 = vmatpush1.bf16.msra.mxu0 %v355
  %466 = vmatprep.subr.bf16.mxu0 0
  %467 = vmatpush1.bf16.msra.mxu0 %v356
  %468 = vmatprep.subr.bf16.mxu0 0
  %469 = vmatpush1.bf16.msra.mxu0 %v357
  %470 = vmatprep.subr.bf16.mxu0 0
  %471 = vmatpush1.bf16.msra.mxu0 %v358
  %472 = vmatprep.subr.bf16.mxu0 0
  %473 = vmatpush1.bf16.msra.mxu0 %v359
  %474 = vmatprep.subr.bf16.mxu0 0
  %475 = vmatpush1.bf16.msra.mxu0 %v360
  %476 = vmatprep.subr.bf16.mxu0 0
  %477 = vmatpush1.bf16.msra.mxu0 %v361
  %478 = vmatprep.subr.bf16.mxu0 0
  %479 = vmatpush1.bf16.msra.mxu0 %v362
  %480 = vmatprep.subr.bf16.mxu0 0
  %481 = vmatpush1.bf16.msra.mxu0 %v363
  %482 = vmatprep.mubr.bf16.mxu0 %v41
  %483 = vmatmul.mubr.bf16.gmra.mrb[0].mxu0 %v40
  %v484 = vpop.f32.mrb[0].mxu0
  %v485 = vadd.f32 %v150, %v484
  %v486 = vpop.f32.mrb[0].mxu0
  %v487 = vpop.f32.mrb[0].mxu0
  %v488 = vpop.f32.mrb[0].mxu0
  %489 = vdwg.mxu0
  %490 = vmatprep.subr.bf16.mxu0 0
  %491 = vmatpush1.bf16.msra.mxu0 %v364
  %492 = vmatprep.subr.bf16.mxu0 0
  %493 = vmatpush1.bf16.msra.mxu0 %v365
  %494 = vmatprep.subr.bf16.mxu0 0
  %495 = vmatpush1.bf16.msra.mxu0 %v366
  %496 = vmatprep.subr.bf16.mxu0 0
  %497 = vmatpush1.bf16.msra.mxu0 %v367
  %498 = vmatprep.subr.bf16.mxu0 0
  %499 = vmatpush1.bf16.msra.mxu0 %v368
  %500 = vmatprep.subr.bf16.mxu0 0
  %501 = vmatpush1.bf16.msra.mxu0 %v369
  %502 = vmatprep.subr.bf16.mxu0 0
  %503 = vmatpush1.bf16.msra.mxu0 %v370
  %504 = vmatprep.subr.bf16.mxu0 0
  %505 = vmatpush1.bf16.msra.mxu0 %v371
  %506 = vmatprep.subr.bf16.mxu0 0
  %507 = vmatpush1.bf16.msra.mxu0 %v372
  %508 = vmatprep.subr.bf16.mxu0 0
  %509 = vmatpush1.bf16.msra.mxu0 %v373
  %510 = vmatprep.subr.bf16.mxu0 0
  %511 = vmatpush1.bf16.msra.mxu0 %v374
  %512 = vmatprep.subr.bf16.mxu0 0
  %513 = vmatpush1.bf16.msra.mxu0 %v375
  %514 = vmatprep.subr.bf16.mxu0 0
  %515 = vmatpush1.bf16.msra.mxu0 %v376
  %516 = vmatprep.subr.bf16.mxu0 0
  %517 = vmatpush1.bf16.msra.mxu0 %v377
  %518 = vmatprep.subr.bf16.mxu0 0
  %519 = vmatpush1.bf16.msra.mxu0 %v378
  %520 = vmatprep.subr.bf16.mxu0 0
  %521 = vmatpush1.bf16.msra.mxu0 %v379
  %522 = vmatprep.mubr.bf16.mxu0 %v43
  %523 = vmatmul.mubr.bf16.gmra.mrb[0].mxu0 %v42
  %v524 = vpop.f32.mrb[0].mxu0
  %v525 = vadd.f32 %v485, %v524
  %v526 = vpop.f32.mrb[0].mxu0
  %v527 = vpop.f32.mrb[0].mxu0
  %v528 = vpop.f32.mrb[0].mxu0
  %529 = vdwg.mxu0
  %530 = vmatprep.subr.bf16.mxu0 0
  %531 = vmatpush1.bf16.msra.mxu0 %v380
  %532 = vmatprep.subr.bf16.mxu0 0
  %533 = vmatpush1.bf16.msra.mxu0 %v381
  %534 = vmatprep.subr.bf16.mxu0 0
  %535 = vmatpush1.bf16.msra.mxu0 %v382
  %536 = vmatprep.subr.bf16.mxu0 0
  %537 = vmatpush1.bf16.msra.mxu0 %v383
  %538 = vmatprep.subr.bf16.mxu0 0
  %539 = vmatpush1.bf16.msra.mxu0 %v384
  %540 = vmatprep.subr.bf16.mxu0 0
  %541 = vmatpush1.bf16.msra.mxu0 %v385
  %542 = vmatprep.subr.bf16.mxu0 0
  %543 = vmatpush1.bf16.msra.mxu0 %v386
  %544 = vmatprep.subr.bf16.mxu0 0
  %545 = vmatpush1.bf16.msra.mxu0 %v387
  %546 = vmatprep.subr.bf16.mxu0 0
  %547 = vmatpush1.bf16.msra.mxu0 %v388
  %548 = vmatprep.subr.bf16.mxu0 0
  %549 = vmatpush1.bf16.msra.mxu0 %v389
  %550 = vmatprep.subr.bf16.mxu0 0
  %551 = vmatpush1.bf16.msra.mxu0 %v390
  %552 = vmatprep.subr.bf16.mxu0 0
  %553 = vmatpush1.bf16.msra.mxu0 %v391
  %554 = vmatprep.subr.bf16.mxu0 0
  %555 = vmatpush1.bf16.msra.mxu0 %v392
  %556 = vmatprep.subr.bf16.mxu0 0
  %557 = vmatpush1.bf16.msra.mxu0 %v393
  %558 = vmatprep.subr.bf16.mxu0 0
  %559 = vmatpush1.bf16.msra.mxu0 %v394
  %560 = vmatprep.subr.bf16.mxu0 0
  %561 = vmatpush1.bf16.msra.mxu0 %v395
  %562 = vmatprep.mubr.bf16.mxu0 %v45
  %563 = vmatmul.mubr.bf16.gmra.mrb[0].mxu0 %v44
  %v564 = vpop.f32.mrb[0].mxu0
  %v565 = vadd.f32 %v525, %v564
  %v566 = vpop.f32.mrb[0].mxu0
  %v567 = vpop.f32.mrb[0].mxu0
  %v568 = vpop.f32.mrb[0].mxu0
  %569 = vdwg.mxu0
  %570 = vmatprep.subr.bf16.mxu0 0
  %571 = vmatpush1.bf16.msra.mxu0 %v396
  %572 = vmatprep.subr.bf16.mxu0 0
  %573 = vmatpush1.bf16.msra.mxu0 0
  %574 = vmatprep.subr.bf16.mxu0 0
  %575 = vmatpush1.bf16.msra.mxu0 0
  %576 = vmatprep.subr.bf16.mxu0 0
  %577 = vmatpush1.bf16.msra.mxu0 0
  %578 = vmatprep.subr.bf16.mxu0 0
  %579 = vmatpush1.bf16.msra.mxu0 0
  %580 = vmatprep.subr.bf16.mxu0 0
  %581 = vmatpush1.bf16.msra.mxu0 0
  %582 = vmatprep.subr.bf16.mxu0 0
  %583 = vmatpush1.bf16.msra.mxu0 0
  %584 = vmatprep.subr.bf16.mxu0 0
  %585 = vmatpush1.bf16.msra.mxu0 0
  %586 = vmatprep.subr.bf16.mxu0 0
  %587 = vmatpush1.bf16.msra.mxu0 0
  %588 = vmatprep.subr.bf16.mxu0 0
  %589 = vmatpush1.bf16.msra.mxu0 0
  %590 = vmatprep.subr.bf16.mxu0 0
  %591 = vmatpush1.bf16.msra.mxu0 0
  %592 = vmatprep.subr.bf16.mxu0 0
  %593 = vmatpush1.bf16.msra.mxu0 0
  %594 = vmatprep.subr.bf16.mxu0 0
  %595 = vmatpush1.bf16.msra.mxu0 0
  %596 = vmatprep.subr.bf16.mxu0 0
  %597 = vmatpush1.bf16.msra.mxu0 0
  %598 = vmatprep.subr.bf16.mxu0 0
  %599 = vmatpush1.bf16.msra.mxu0 0
  %600 = vmatprep.subr.bf16.mxu0 0
  %601 = vmatpush1.bf16.msra.mxu0 0
  %602 = vmatprep.mubr.bf16.mxu0 0
  %603 = vmatmul.mubr.bf16.gmra.mrb[0].mxu0 %v448
  %v604 = vpop.f32.mrb[0].mxu0
  %v605 = vadd.f32 %v565, %v604
  %v606 = vpop.f32.mrb[0].mxu0
  %v607 = vpop.f32.mrb[0].mxu0
  %v608 = vpop.f32.mrb[0].mxu0
  %609 = vdwg.mxu0
  %v610 = vmax.f32 %v605, 0.0
  %v611 = vpack.c.bf16 %v610, %v610
  %v612 = vld [vmem:[%s3] sm:$0xf]
  %v613 = vld [vmem:[%s3 + $0x4] sm:$0xf]
  %v614 = vld [vmem:[%s3 + $0x8] sm:$0xf]
  %v615 = vld [vmem:[%s3 + $0xc] sm:$0xf]
  %v616 = vld [vmem:[%s3 + $0x10] sm:$0xf]
  %v617 = vld [vmem:[%s3 + $0x14] sm:$0xf]
  %v618 = vld [vmem:[%s3 + $0x18] sm:$0xf]
  %v619 = vld [vmem:[%s3 + $0x1c] sm:$0xf]
  %v620 = vld [vmem:[%s3 + $0x20] sm:$0xf]
  %v621 = vld [vmem:[%s3 + $0x24] sm:$0xf]
  %v622 = vld [vmem:[%s3 + $0x28] sm:$0xf]
  %v623 = vld [vmem:[%s3 + $0x2c] sm:$0xf]
  %v624 = vld [vmem:[%s3 + $0x30] sm:$0xf]
  %v625 = vld [vmem:[%s3 + $0x34] sm:$0xf]
  %v626 = vld [vmem:[%s3 + $0x38] sm:$0xf]
  %v627 = vld [vmem:[%s3 + $0x3c] sm:$0xf]
  %v628 = vld [vmem:[%s4] sm:$0x1]
  %v630 = vlaneseq
  %v631 = vshrl.u32 %v630, 7
  %v632 = vsub.s32 0, %v631
  %v633 = vrot.slane %v628, %v632
  %v651 = vunpack.c.l.b16 %v612
  %v652 = vunpack.c.l.b16 %v613
  %v653 = vunpack.c.l.b16 %v614
  %v654 = vunpack.c.l.b16 %v615
  %v655 = vunpack.c.l.b16 %v616
  %v656 = vunpack.c.l.b16 %v617
  %v657 = vunpack.c.l.b16 %v618
  %v658 = vunpack.c.l.b16 %v619
  %v659 = vunpack.c.l.b16 %v620
  %v660 = vunpack.c.l.b16 %v621
  %v661 = vunpack.c.l.b16 %v622
  %v662 = vunpack.c.l.b16 %v623
  %v663 = vunpack.c.l.b16 %v624
  %v664 = vunpack.c.l.b16 %v625
  %v665 = vunpack.c.l.b16 %v626
  %v666 = vunpack.c.l.b16 %v627
  %v667 = vpack.c.b16 %v652, %v651
  %v668 = vpack.c.b16 %v654, %v653
  %v669 = vpack.c.b16 %v656, %v655
  %v670 = vpack.c.b16 %v658, %v657
  %v671 = vpack.c.b16 %v660, %v659
  %v672 = vpack.c.b16 %v662, %v661
  %v673 = vpack.c.b16 %v664, %v663
  %v674 = vpack.c.b16 %v666, %v665
  %683 = vmatprep.subr.bf16.mxu0 0
  %684 = vmatpush1.bf16.msra.mxu0 %v667
  %685 = vmatprep.subr.bf16.mxu0 0
  %686 = vmatpush1.bf16.msra.mxu0 %v668
  %687 = vmatprep.subr.bf16.mxu0 0
  %688 = vmatpush1.bf16.msra.mxu0 %v669
  %689 = vmatprep.subr.bf16.mxu0 0
  %690 = vmatpush1.bf16.msra.mxu0 %v670
  %691 = vmatprep.subr.bf16.mxu0 0
  %692 = vmatpush1.bf16.msra.mxu0 %v671
  %693 = vmatprep.subr.bf16.mxu0 0
  %694 = vmatpush1.bf16.msra.mxu0 %v672
  %695 = vmatprep.subr.bf16.mxu0 0
  %696 = vmatpush1.bf16.msra.mxu0 %v673
  %697 = vmatprep.subr.bf16.mxu0 0
  %698 = vmatpush1.bf16.msra.mxu0 %v674
  %699 = vmatprep.subr.bf16.mxu0 0
  %700 = vmatpush1.bf16.msra.mxu0 0
  %701 = vmatprep.subr.bf16.mxu0 0
  %702 = vmatpush1.bf16.msra.mxu0 0
  %703 = vmatprep.subr.bf16.mxu0 0
  %704 = vmatpush1.bf16.msra.mxu0 0
  %705 = vmatprep.subr.bf16.mxu0 0
  %706 = vmatpush1.bf16.msra.mxu0 0
  %707 = vmatprep.subr.bf16.mxu0 0
  %708 = vmatpush1.bf16.msra.mxu0 0
  %709 = vmatprep.subr.bf16.mxu0 0
  %710 = vmatpush1.bf16.msra.mxu0 0
  %711 = vmatprep.subr.bf16.mxu0 0
  %712 = vmatpush1.bf16.msra.mxu0 0
  %713 = vmatprep.subr.bf16.mxu0 0
  %714 = vmatpush1.bf16.msra.mxu0 0
  %715 = vmatprep.mubr.bf16.mxu0 0
  %716 = vmatmul.mubr.bf16.gmra.mrb[0].mxu0 %v611
  %v717 = vpop.f32.mrb[0].mxu0
  %v718 = vadd.f32 %v633, %v717
  %v719 = vpop.f32.mrb[0].mxu0
  %v720 = vpop.f32.mrb[0].mxu0
  %v721 = vpop.f32.mrb[0].mxu0
  %722 = vdwg.mxu0
  %v723 = vmax.f32 %v718, 0.0
  %v724 = vpack.c.bf16 %v723, %v723
  %v725 = vld [vmem:[%s5] sm:$0xf]
  %v726 = vld [vmem:[%s5 + $0x4] sm:$0xf]
  %v727 = vld [vmem:[%s5 + $0x8] sm:$0xf]
  %v728 = vld [vmem:[%s5 + $0xc] sm:$0xf]
  %v729 = vld [vmem:[%s5 + $0x10] sm:$0xf]
  %v730 = vld [vmem:[%s5 + $0x14] sm:$0xf]
  %v731 = vld [vmem:[%s5 + $0x18] sm:$0xf]
  %v732 = vld [vmem:[%s5 + $0x1c] sm:$0xf]
  %v733 = vld [vmem:[%s5 + $0x20] sm:$0xf]
  %v734 = vld [vmem:[%s5 + $0x24] sm:$0xf]
  %v735 = vld [vmem:[%s5 + $0x28] sm:$0xf]
  %v736 = vld [vmem:[%s5 + $0x2c] sm:$0xf]
  %v737 = vld [vmem:[%s5 + $0x30] sm:$0xf]
  %v738 = vld [vmem:[%s5 + $0x34] sm:$0xf]
  %v739 = vld [vmem:[%s5 + $0x38] sm:$0xf]
  %v740 = vld [vmem:[%s5 + $0x3c] sm:$0xf]
  %v741 = vld [vmem:[%s6] sm:$0x1]
  %v743 = vlaneseq
  %v744 = vshrl.u32 %v743, 7
  %v745 = vsub.s32 0, %v744
  %v746 = vrot.slane %v741, %v745
  %v764 = vunpack.c.l.b16 %v725
  %v765 = vunpack.c.l.b16 %v726
  %v766 = vunpack.c.l.b16 %v727
  %v767 = vunpack.c.l.b16 %v728
  %v768 = vunpack.c.l.b16 %v729
  %v769 = vunpack.c.l.b16 %v730
  %v770 = vunpack.c.l.b16 %v731
  %v771 = vunpack.c.l.b16 %v732
  %v772 = vunpack.c.l.b16 %v733
  %v773 = vunpack.c.l.b16 %v734
  %v774 = vunpack.c.l.b16 %v735
  %v775 = vunpack.c.l.b16 %v736
  %v776 = vunpack.c.l.b16 %v737
  %v777 = vunpack.c.l.b16 %v738
  %v778 = vunpack.c.l.b16 %v739
  %v779 = vunpack.c.l.b16 %v740
  %v780 = vpack.c.b16 %v765, %v764
  %v781 = vpack.c.b16 %v767, %v766
  %v782 = vpack.c.b16 %v769, %v768
  %v783 = vpack.c.b16 %v771, %v770
  %v784 = vpack.c.b16 %v773, %v772
  %v785 = vpack.c.b16 %v775, %v774
  %v786 = vpack.c.b16 %v777, %v776
  %v787 = vpack.c.b16 %v779, %v778
  %796 = vmatprep.subr.bf16.mxu0 0
  %797 = vmatpush1.bf16.msra.mxu0 %v780
  %798 = vmatprep.subr.bf16.mxu0 0
  %799 = vmatpush1.bf16.msra.mxu0 %v781
  %800 = vmatprep.subr.bf16.mxu0 0
  %801 = vmatpush1.bf16.msra.mxu0 %v782
  %802 = vmatprep.subr.bf16.mxu0 0
  %803 = vmatpush1.bf16.msra.mxu0 %v783
  %804 = vmatprep.subr.bf16.mxu0 0
  %805 = vmatpush1.bf16.msra.mxu0 %v784
  %806 = vmatprep.subr.bf16.mxu0 0
  %807 = vmatpush1.bf16.msra.mxu0 %v785
  %808 = vmatprep.subr.bf16.mxu0 0
  %809 = vmatpush1.bf16.msra.mxu0 %v786
  %810 = vmatprep.subr.bf16.mxu0 0
  %811 = vmatpush1.bf16.msra.mxu0 %v787
  %812 = vmatprep.subr.bf16.mxu0 0
  %813 = vmatpush1.bf16.msra.mxu0 0
  %814 = vmatprep.subr.bf16.mxu0 0
  %815 = vmatpush1.bf16.msra.mxu0 0
  %816 = vmatprep.subr.bf16.mxu0 0
  %817 = vmatpush1.bf16.msra.mxu0 0
  %818 = vmatprep.subr.bf16.mxu0 0
  %819 = vmatpush1.bf16.msra.mxu0 0
  %820 = vmatprep.subr.bf16.mxu0 0
  %821 = vmatpush1.bf16.msra.mxu0 0
  %822 = vmatprep.subr.bf16.mxu0 0
  %823 = vmatpush1.bf16.msra.mxu0 0
  %824 = vmatprep.subr.bf16.mxu0 0
  %825 = vmatpush1.bf16.msra.mxu0 0
  %826 = vmatprep.subr.bf16.mxu0 0
  %827 = vmatpush1.bf16.msra.mxu0 0
  %828 = vmatprep.mubr.bf16.mxu0 0
  %829 = vmatmul.mubr.bf16.gmra.mrb[0].mxu0 %v724
  %v830 = vpop.f32.mrb[0].mxu0
  %v831 = vadd.f32 %v746, %v830
  %v832 = vpop.f32.mrb[0].mxu0
  %v833 = vpop.f32.mrb[0].mxu0
  %v834 = vpop.f32.mrb[0].mxu0
  %835 = vdwg.mxu0
  %v836 = vmax.f32 %v831, 0.0
  %v837 = vpack.c.bf16 %v836, %v836
  %v838 = vld [vmem:[%s7] sm:$0xf]
  %v839 = vld [vmem:[%s7 + $0x4] sm:$0xf]
  %v840 = vld [vmem:[%s7 + $0x8] sm:$0xf]
  %v841 = vld [vmem:[%s7 + $0xc] sm:$0xf]
  %v842 = vld [vmem:[%s7 + $0x10] sm:$0xf]
  %v843 = vld [vmem:[%s7 + $0x14] sm:$0xf]
  %v844 = vld [vmem:[%s7 + $0x18] sm:$0xf]
  %v845 = vld [vmem:[%s7 + $0x1c] sm:$0xf]
  %v846 = vld [vmem:[%s7 + $0x20] sm:$0xf]
  %v847 = vld [vmem:[%s7 + $0x24] sm:$0xf]
  %v848 = vld [vmem:[%s7 + $0x28] sm:$0xf]
  %v849 = vld [vmem:[%s7 + $0x2c] sm:$0xf]
  %v850 = vld [vmem:[%s7 + $0x30] sm:$0xf]
  %v851 = vld [vmem:[%s7 + $0x34] sm:$0xf]
  %v852 = vld [vmem:[%s7 + $0x38] sm:$0xf]
  %v853 = vld [vmem:[%s7 + $0x3c] sm:$0xf]
  %v854 = vld [vmem:[%s8] sm:$0x1]
  %v856 = vlaneseq
  %v857 = vshrl.u32 %v856, 7
  %v858 = vsub.s32 0, %v857
  %v859 = vrot.slane %v854, %v858
  %v877 = vunpack.c.l.b16 %v838
  %v878 = vunpack.c.l.b16 %v839
  %v879 = vunpack.c.l.b16 %v840
  %v880 = vunpack.c.l.b16 %v841
  %v881 = vunpack.c.l.b16 %v842
  %v882 = vunpack.c.l.b16 %v843
  %v883 = vunpack.c.l.b16 %v844
  %v884 = vunpack.c.l.b16 %v845
  %v885 = vunpack.c.l.b16 %v846
  %v886 = vunpack.c.l.b16 %v847
  %v887 = vunpack.c.l.b16 %v848
  %v888 = vunpack.c.l.b16 %v849
  %v889 = vunpack.c.l.b16 %v850
  %v890 = vunpack.c.l.b16 %v851
  %v891 = vunpack.c.l.b16 %v852
  %v892 = vunpack.c.l.b16 %v853
  %v893 = vpack.c.b16 %v878, %v877
  %v894 = vpack.c.b16 %v880, %v879
  %v895 = vpack.c.b16 %v882, %v881
  %v896 = vpack.c.b16 %v884, %v883
  %v897 = vpack.c.b16 %v886, %v885
  %v898 = vpack.c.b16 %v888, %v887
  %v899 = vpack.c.b16 %v890, %v889
  %v900 = vpack.c.b16 %v892, %v891
  %909 = vmatprep.subr.bf16.mxu0 0
  %910 = vmatpush1.bf16.msra.mxu0 %v893
  %911 = vmatprep.subr.bf16.mxu0 0
  %912 = vmatpush1.bf16.msra.mxu0 %v894
  %913 = vmatprep.subr.bf16.mxu0 0
  %914 = vmatpush1.bf16.msra.mxu0 %v895
  %915 = vmatprep.subr.bf16.mxu0 0
  %916 = vmatpush1.bf16.msra.mxu0 %v896
  %917 = vmatprep.subr.bf16.mxu0 0
  %918 = vmatpush1.bf16.msra.mxu0 %v897
  %919 = vmatprep.subr.bf16.mxu0 0
  %920 = vmatpush1.bf16.msra.mxu0 %v898
  %921 = vmatprep.subr.bf16.mxu0 0
  %922 = vmatpush1.bf16.msra.mxu0 %v899
  %923 = vmatprep.subr.bf16.mxu0 0
  %924 = vmatpush1.bf16.msra.mxu0 %v900
  %925 = vmatprep.subr.bf16.mxu0 0
  %926 = vmatpush1.bf16.msra.mxu0 0
  %927 = vmatprep.subr.bf16.mxu0 0
  %928 = vmatpush1.bf16.msra.mxu0 0
  %929 = vmatprep.subr.bf16.mxu0 0
  %930 = vmatpush1.bf16.msra.mxu0 0
  %931 = vmatprep.subr.bf16.mxu0 0
  %932 = vmatpush1.bf16.msra.mxu0 0
  %933 = vmatprep.subr.bf16.mxu0 0
  %934 = vmatpush1.bf16.msra.mxu0 0
  %935 = vmatprep.subr.bf16.mxu0 0
  %936 = vmatpush1.bf16.msra.mxu0 0
  %937 = vmatprep.subr.bf16.mxu0 0
  %938 = vmatpush1.bf16.msra.mxu0 0
  %939 = vmatprep.subr.bf16.mxu0 0
  %940 = vmatpush1.bf16.msra.mxu0 0
  %941 = vmatprep.mubr.bf16.mxu0 0
  %942 = vmatmul.mubr.bf16.gmra.mrb[0].mxu0 %v837
  %v943 = vpop.f32.mrb[0].mxu0
  %v944 = vadd.f32 %v859, %v943
  %v945 = vpop.f32.mrb[0].mxu0
  %v946 = vpop.f32.mrb[0].mxu0
  %v947 = vpop.f32.mrb[0].mxu0
  %948 = vdwg.mxu0
  %v949 = vmax.f32 %v944, 0.0
  %950 = vst [vmem:[%s9] sm:$0xff] %v949
  // Predicated region
  $region38: #{mlp_forward.1} parent=0 // pred_check
    _
  $region39: #{mlp_forward.1} parent=0 // pred_check_branch
    %952 = sbr.rel (0) target = $region41
  $region40: #{mlp_forward.1} parent=0 // pred_region
    _
  $region41: #{mlp_forward.1} parent=0 // pred_fallthru
    _
  // Predicated region
  $region42: #{mlp_forward.1} parent=0 // pred_check
    _
  $region43: #{mlp_forward.1} parent=0 // pred_check_branch
    %954 = sbr.rel (0) target = $region45
  $region44: #{mlp_forward.1} parent=0 // pred_region
    _
  $region45: #{mlp_forward.1} parent=0 // pred_fallthru
    _

</llo_original>
